<compile_context>
chip_gen: v5e
topology: v5e:2x2
jax: 0.10.0
libtpu: 0.0.40
codegen_flags: <defaults>
</compile_context>

<pallas_src>
import functools
import math

import jax
import jax.numpy as jnp
from jax import lax
from jax.experimental import pallas as pl
from jax.experimental.pallas import tpu as pltpu


def _round_up(x, m):
    return -(-x // m) * m


def _choose_batch_tile(batch, requested):
    """Pick a batch tile (multiple of 8) and the padded batch size."""
    b8 = _round_up(max(int(batch), 1), 8)
    tb = max(8, min(_round_up(int(requested), 8), b8))
    # v7x megacore: give the grid >= 2 steps when the batch allows it so
    # dimension_semantics=("parallel",) actually feeds both TensorCores.
    if b8 >= 16 and b8 // tb < 2:
        tb = max(8, _round_up(-(-b8 // 2), 8))
    b_pad = _round_up(int(batch), tb)
    return tb, b_pad


def prepare_params(emb_table, proj_w, proj_b, *,
                   vmem_table_limit_bytes=8 * 1024 * 1024,
                   max_resident_vocab=4096,
                   force_hbm=False):
    """One-time (init) parameter preparation; no per-call table copies."""
    V, D = emb_table.shape
    H = proj_w.shape[0]
    H_pad = _round_up(H, 128)

    use_vmem = (not force_hbm
                and V * D * 2 <= vmem_table_limit_bytes   # bf16 table bytes
                and V <= max_resident_vocab)              # one-hot width bound

    if use_vmem:
        emb = emb_table.astype(jnp.bfloat16)              # VMEM-resident table
    else:
        emb = emb_table.astype(jnp.float32)               # HBM table, row DMAs

    # Host-side transpose once: (H, D) -> (D, H_pad) bf16 so the in-kernel
    # projection is a native (M, K) x (K, N) MXU matmul (no per-tile realign).
    w_t = jnp.zeros((D, H_pad), jnp.bfloat16).at[:, :H].set(
        proj_w.T.astype(jnp.bfloat16))
    b_row = jnp.zeros((1, H_pad), jnp.float32).at[0, :H].set(
        proj_b.astype(jnp.float32))

    return dict(emb=emb, w_t=w_t, b=b_row, H=H, vmem_path=use_vmem)


# ----------------------------------------------------------------------------
# Fast path: whole embedding table resident in VMEM.
# ----------------------------------------------------------------------------
def _bow_vmem_kernel(ids_ref, len_ref, emb_ref, w_ref, b_ref, out_ref):
    """ids (TB,L) i32 | len (TB,1) f32 | emb (V,D) bf16 | W^T (D,H_pad) bf16
    bias (1,H_pad) f32 | out (TB,H_pad) f32."""
    TB, L = ids_ref.shape
    V = emb_ref.shape[0]

    ids = ids_ref[...]
    vocab = lax.broadcasted_iota(jnp.int32, (TB, V), 1)         # hoisted
    counts = jnp.zeros((TB, V), jnp.float32)
    for l in range(L):                                          # static unroll
        counts = counts + jnp.where(ids[:, l:l + 1] == vocab, 1.0, 0.0)

    # Bag sums as an MXU matmul: (TB, V) x (V, D).  counts <= L are exact
    # in bf16 (integers up to 256).
    sums = jnp.dot(counts.astype(jnp.bfloat16), emb_ref[...],
                   preferred_element_type=jnp.float32)          # (TB, D) f32

    inv_len = pl.reciprocal(len_ref[...], approx=False)         # (TB, 1) f32
    h = (sums * inv_len).astype(jnp.bfloat16)                   # (TB, D)

    out = jnp.dot(h, w_ref[...], preferred_element_type=jnp.float32)
    out_ref[...] = out + b_ref[...]


# ----------------------------------------------------------------------------
# Large-vocab path: HBM table, double-buffered DMA row gather per 8-bag chunk.
# ----------------------------------------------------------------------------
def _bow_hbm_kernel(ids_ref, len_ref, emb_hbm, w_ref, b_ref, out_ref,
                    rows, acc, sem, *, L, CG):
    """ids SMEM (B_pad*L,) i32 | len (TB,1) f32 | emb HBM (V,D) f32
    W^T (D,H_pad) bf16 | bias (1,H_pad) f32 | out (TB,H_pad) f32
    rows (2, CG*L, D) f32 | acc (TB, D) f32 | sem DMA (2,)."""
    t = pl.program_id(0)
    TB = out_ref.shape[0]
    rows_per_chunk = CG * L
    n_chunks = TB // CG
    tile_base = t * TB * L

    def start_chunk(c, slot):
        base = tile_base + c * rows_per_chunk
        for r in range(rows_per_chunk):                         # static unroll
            tok = ids_ref[base + r]
            pltpu.make_async_copy(
                emb_hbm.at[pl.ds(tok, 1), :],
                rows.at[slot, pl.ds(r, 1), :],
                sem.at[slot]).start()

    def wait_chunk(slot):
        for r in range(rows_per_chunk):
            pltpu.make_async_copy(
                emb_hbm.at[pl.ds(0, 1), :],
                rows.at[slot, pl.ds(r, 1), :],
                sem.at[slot]).wait()

    # Static segment-sum matrix: seg[i, j] = 1 iff gathered row j is bag i.
    col = lax.broadcasted_iota(jnp.int32, (CG, rows_per_chunk), 1)
    bag = lax.broadcasted_iota(jnp.int32, (CG, rows_per_chunk), 0)
    lo = bag * L
    seg = jnp.where((col >= lo) & (col < lo + L), 1.0, 0.0)

    start_chunk(0, 0)                                           # prime slot 0

    @pl.loop(0, n_chunks)
    def _(c):
        slot = c % 2
        wait_chunk(slot)

        @pl.when(c + 1 < n_chunks)
        def _():
            start_chunk(c + 1, 1 - slot)                        # prefetch next

        # (CG, CG*L) x (CG*L, D) -> per-bag sums for this chunk, stored as one
        # sublane-aligned (CG, D) slab (no per-row masked stores).
        chunk_sums = jnp.dot(seg, rows[slot],
                             preferred_element_type=jnp.float32)
        off = pl.multiple_of(c * CG, CG)
        acc[pl.ds(off, CG), :] = chunk_sums

    inv_len = pl.reciprocal(len_ref[...], approx=False)         # (TB, 1)
    h = (acc[...] * inv_len).astype(jnp.bfloat16)               # (TB, D)
    out = jnp.dot(h, w_ref[...], preferred_element_type=jnp.float32)
    out_ref[...] = out + b_ref[...]


# ----------------------------------------------------------------------------
# Wrapper
# ----------------------------------------------------------------------------
def bag_of_words_forward(x_ids, length, params, *, batch_tile=256,
                         chunk_bags=8):
    """x_ids: (B, L) int; length: (B,) int; params from prepare_params().
    Returns (B, H) f32 == proj(emb(x).sum(1) / length[:, None])."""
    emb, w_t, b_row = params["emb"], params["w_t"], params["b"]
    H = params["H"]
    V, D = emb.shape
    H_pad = w_t.shape[1]
    B, L = x_ids.shape

    TB, B_pad = _choose_batch_tile(B, batch_tile)
    grid = (B_pad // TB,)

    # Per-call work is O(B) only.
    ids = jnp.clip(x_ids.astype(jnp.int32), 0, V - 1)
    len_p = jnp.ones((B_pad, 1), jnp.float32)
    len_p = len_p.at[:B, 0].set(length.astype(jnp.float32))

    cparams = pltpu.CompilerParams(dimension_semantics=("parallel",))

    if params["vmem_path"]:
        ids_p = jnp.zeros((B_pad, L), jnp.int32).at[:B].set(ids)
        out = pl.pallas_call(
            _bow_vmem_kernel,
            out_shape=jax.ShapeDtypeStruct((B_pad, H_pad), jnp.float32),
            grid_spec=pltpu.PrefetchScalarGridSpec(
                num_scalar_prefetch=0,
                grid=grid,
                in_specs=[
                    pl.BlockSpec((TB, L), lambda t: (t, 0)),        # ids
                    pl.BlockSpec((TB, 1), lambda t: (t, 0)),        # lengths
                    pl.BlockSpec((V, D), lambda t: (0, 0)),         # table (VMEM)
                    pl.BlockSpec((D, H_pad), lambda t: (0, 0)),     # W^T
                    pl.BlockSpec((1, H_pad), lambda t: (0, 0)),     # bias
                ],
                out_specs=pl.BlockSpec((TB, H_pad), lambda t: (t, 0)),
            ),
            compiler_params=cparams,
        )(ids_p, len_p, emb, w_t, b_row)
    else:
        CG = chunk_bags
        assert TB % CG == 0
        ids_flat = jnp.zeros((B_pad * L,), jnp.int32)
        ids_flat = ids_flat.at[:B * L].set(ids.reshape(-1))
        kernel = functools.partial(_bow_hbm_kernel, L=L, CG=CG)
        out = pl.pallas_call(
            kernel,
            out_shape=jax.ShapeDtypeStruct((B_pad, H_pad), jnp.float32),
            grid_spec=pltpu.PrefetchScalarGridSpec(
                num_scalar_prefetch=1,                         # flat ids -> SMEM
                grid=grid,
                in_specs=[
                    pl.BlockSpec((TB, 1), lambda t, ids: (t, 0)),     # lengths
                    pl.BlockSpec(memory_space=pl.ANY),                # table (HBM)
                    pl.BlockSpec((D, H_pad), lambda t, ids: (0, 0)),  # W^T
                    pl.BlockSpec((1, H_pad), lambda t, ids: (0, 0)),  # bias
                ],
                out_specs=pl.BlockSpec((TB, H_pad), lambda t, ids: (t, 0)),
                scratch_shapes=[
                    pltpu.VMEM((2, CG * L, D), jnp.float32),  # dbl-buffered rows
                    pltpu.VMEM((TB, D), jnp.float32),         # per-bag sums
                    pltpu.SemaphoreType.DMA((2,)),
                ],
            ),
            compiler_params=cparams,
        )(ids_flat, len_p, emb, w_t, b_row)

    return out[:B, :H]


def _reference(x_ids, length, emb_table, proj_w, proj_b):
    h = jnp.take(emb_table, x_ids, axis=0).sum(axis=1)
    h = h / length.astype(jnp.float32)[:, None]
    return h @ proj_w.T + proj_b


if __name__ == "__main__":
    # Small synthetic config consistent with the module:
    # vocab V=64, pretrained dim D=32, hidden_dims H=16.
    V, D, H, PAD_IDX = 64, 32, 16, 0

    key = jax.random.PRNGKey(0)
    k_emb, k_w, k_ids, k_len, k_ids2, k_len2 = jax.random.split(key, 6)

    # "Pretrained" embedding table with the padding row zeroed (padding_idx).
    emb_table = jax.random.normal(k_emb, (V, D), dtype=jnp.float32) * 0.1
    emb_table = emb_table.at[PAD_IDX].set(0.0)

    # Linear(D, H): xavier_uniform_ weight, zero bias.
    bound = math.sqrt(6.0 / (D + H))
    proj_w = jax.random.uniform(k_w, (H, D), dtype=jnp.float32,
                                minval=-bound, maxval=bound)
    proj_b = jnp.zeros((H,), dtype=jnp.float32)

    # Init-time preparation (once, not per forward call).
    params_vmem = prepare_params(emb_table, proj_w, proj_b)
    params_hbm = prepare_params(emb_table, proj_w, proj_b, force_hbm=True)
    assert params_vmem["vmem_path"] and not params_hbm["vmem_path"]

    ok = True
    configs = [(8, 8, k_ids, k_len),     # single-tile grid
               (40, 6, k_ids2, k_len2)]  # multi-tile grid (>=2 parallel steps)
    for (B, L, kid, klen) in configs:
        x_ids = jax.random.randint(kid, (B, L), 0, V, dtype=jnp.int32)
        length = jax.random.randint(klen, (B,), 1, L + 1, dtype=jnp.int32)
        ref = _reference(x_ids, length, emb_table, proj_w, proj_b)

        for params in (params_vmem, params_hbm):
            out = bag_of_words_forward(x_ids, length, params)
            out = jax.block_until_ready(out)
            assert out.shape == (B, H)
            ok &= bool(jnp.allclose(out, ref, atol=1e-2, rtol=1e-2))

    assert ok, "mismatch vs reference"
    print("KERNEL_OK")
</pallas_src>

<mosaic_0001>
module attributes {stable_mosaic.version = 11 : i64} {
  func.func @_bow_vmem_kernel(%arg0: i32, %arg1: memref<8x8xi32, #tpu.memory_space<vmem>>, %arg2: memref<8x1xf32, #tpu.memory_space<vmem>>, %arg3: memref<64x32xbf16, #tpu.memory_space<vmem>>, %arg4: memref<32x128xbf16, #tpu.memory_space<vmem>>, %arg5: memref<1x128xf32, #tpu.memory_space<vmem>>, %arg6: memref<8x128xf32, #tpu.memory_space<vmem>>) attributes {dimension_semantics = [#tpu.dimension_semantics<parallel>], iteration_bounds = array<i64: 1>, scalar_prefetch = 0 : i64, scratch_operands = 0 : i64, tpu.core_type = #tpu.core_type<tc>, window_params = [{transform_indices = @transform_0, window_bounds = array<i64: 8, 8>}, {transform_indices = @transform_1, window_bounds = array<i64: 8, 1>}, {pipeline_mode = #tpu.pipeline_mode<synchronous>, transform_indices = @transform_2, window_bounds = array<i64: 64, 32>}, {pipeline_mode = #tpu.pipeline_mode<synchronous>, transform_indices = @transform_3, window_bounds = array<i64: 32, 128>}, {pipeline_mode = #tpu.pipeline_mode<synchronous>, transform_indices = @transform_4, window_bounds = array<i64: 1, 128>}, {transform_indices = @transform_5, window_bounds = array<i64: 8, 128>}]} {
    %c0 = arith.constant 0 : index
    %c0_0 = arith.constant 0 : index
    %0 = vector.load %arg1[%c0, %c0_0] : memref<8x8xi32, #tpu.memory_space<vmem>>, vector<8x8xi32>
    %1 = tpu.iota {dimensions = array<i32: 1>} : vector<8x64xi32>
    %cst = arith.constant 0.000000e+00 : f32
    %2 = vector.broadcast %cst : f32 to vector<8x64xf32>
    %3 = vector.extract_strided_slice %0 {offsets = [0, 0], sizes = [8, 1], strides = [1, 1]} : vector<8x8xi32> to vector<8x1xi32>
    %4 = vector.broadcast %3 : vector<8x1xi32> to vector<8x64xi32>
    %5 = arith.cmpi eq, %4, %1 : vector<8x64xi32>
    %cst_1 = arith.constant 1.000000e+00 : f32
    %cst_2 = arith.constant 0.000000e+00 : f32
    %6 = vector.broadcast %cst_1 : f32 to vector<8x64xf32>
    %7 = vector.broadcast %cst_2 : f32 to vector<8x64xf32>
    %8 = arith.select %5, %6, %7 : vector<8x64xi1>, vector<8x64xf32>
    %9 = arith.addf %2, %8 : vector<8x64xf32>
    %10 = vector.extract_strided_slice %0 {offsets = [0, 1], sizes = [8, 1], strides = [1, 1]} : vector<8x8xi32> to vector<8x1xi32>
    %11 = vector.broadcast %10 : vector<8x1xi32> to vector<8x64xi32>
    %12 = arith.cmpi eq, %11, %1 : vector<8x64xi32>
    %cst_3 = arith.constant 1.000000e+00 : f32
    %cst_4 = arith.constant 0.000000e+00 : f32
    %13 = vector.broadcast %cst_3 : f32 to vector<8x64xf32>
    %14 = vector.broadcast %cst_4 : f32 to vector<8x64xf32>
    %15 = arith.select %12, %13, %14 : vector<8x64xi1>, vector<8x64xf32>
    %16 = arith.addf %9, %15 : vector<8x64xf32>
    %17 = vector.extract_strided_slice %0 {offsets = [0, 2], sizes = [8, 1], strides = [1, 1]} : vector<8x8xi32> to vector<8x1xi32>
    %18 = vector.broadcast %17 : vector<8x1xi32> to vector<8x64xi32>
    %19 = arith.cmpi eq, %18, %1 : vector<8x64xi32>
    %cst_5 = arith.constant 1.000000e+00 : f32
    %cst_6 = arith.constant 0.000000e+00 : f32
    %20 = vector.broadcast %cst_5 : f32 to vector<8x64xf32>
    %21 = vector.broadcast %cst_6 : f32 to vector<8x64xf32>
    %22 = arith.select %19, %20, %21 : vector<8x64xi1>, vector<8x64xf32>
    %23 = arith.addf %16, %22 : vector<8x64xf32>
    %24 = vector.extract_strided_slice %0 {offsets = [0, 3], sizes = [8, 1], strides = [1, 1]} : vector<8x8xi32> to vector<8x1xi32>
    %25 = vector.broadcast %24 : vector<8x1xi32> to vector<8x64xi32>
    %26 = arith.cmpi eq, %25, %1 : vector<8x64xi32>
    %cst_7 = arith.constant 1.000000e+00 : f32
    %cst_8 = arith.constant 0.000000e+00 : f32
    %27 = vector.broadcast %cst_7 : f32 to vector<8x64xf32>
    %28 = vector.broadcast %cst_8 : f32 to vector<8x64xf32>
    %29 = arith.select %26, %27, %28 : vector<8x64xi1>, vector<8x64xf32>
    %30 = arith.addf %23, %29 : vector<8x64xf32>
    %31 = vector.extract_strided_slice %0 {offsets = [0, 4], sizes = [8, 1], strides = [1, 1]} : vector<8x8xi32> to vector<8x1xi32>
    %32 = vector.broadcast %31 : vector<8x1xi32> to vector<8x64xi32>
    %33 = arith.cmpi eq, %32, %1 : vector<8x64xi32>
    %cst_9 = arith.constant 1.000000e+00 : f32
    %cst_10 = arith.constant 0.000000e+00 : f32
    %34 = vector.broadcast %cst_9 : f32 to vector<8x64xf32>
    %35 = vector.broadcast %cst_10 : f32 to vector<8x64xf32>
    %36 = arith.select %33, %34, %35 : vector<8x64xi1>, vector<8x64xf32>
    %37 = arith.addf %30, %36 : vector<8x64xf32>
    %38 = vector.extract_strided_slice %0 {offsets = [0, 5], sizes = [8, 1], strides = [1, 1]} : vector<8x8xi32> to vector<8x1xi32>
    %39 = vector.broadcast %38 : vector<8x1xi32> to vector<8x64xi32>
    %40 = arith.cmpi eq, %39, %1 : vector<8x64xi32>
    %cst_11 = arith.constant 1.000000e+00 : f32
    %cst_12 = arith.constant 0.000000e+00 : f32
    %41 = vector.broadcast %cst_11 : f32 to vector<8x64xf32>
    %42 = vector.broadcast %cst_12 : f32 to vector<8x64xf32>
    %43 = arith.select %40, %41, %42 : vector<8x64xi1>, vector<8x64xf32>
    %44 = arith.addf %37, %43 : vector<8x64xf32>
    %45 = vector.extract_strided_slice %0 {offsets = [0, 6], sizes = [8, 1], strides = [1, 1]} : vector<8x8xi32> to vector<8x1xi32>
    %46 = vector.broadcast %45 : vector<8x1xi32> to vector<8x64xi32>
    %47 = arith.cmpi eq, %46, %1 : vector<8x64xi32>
    %cst_13 = arith.constant 1.000000e+00 : f32
    %cst_14 = arith.constant 0.000000e+00 : f32
    %48 = vector.broadcast %cst_13 : f32 to vector<8x64xf32>
    %49 = vector.broadcast %cst_14 : f32 to vector<8x64xf32>
    %50 = arith.select %47, %48, %49 : vector<8x64xi1>, vector<8x64xf32>
    %51 = arith.addf %44, %50 : vector<8x64xf32>
    %52 = vector.extract_strided_slice %0 {offsets = [0, 7], sizes = [8, 1], strides = [1, 1]} : vector<8x8xi32> to vector<8x1xi32>
    %53 = vector.broadcast %52 : vector<8x1xi32> to vector<8x64xi32>
    %54 = arith.cmpi eq, %53, %1 : vector<8x64xi32>
    %cst_15 = arith.constant 1.000000e+00 : f32
    %cst_16 = arith.constant 0.000000e+00 : f32
    %55 = vector.broadcast %cst_15 : f32 to vector<8x64xf32>
    %56 = vector.broadcast %cst_16 : f32 to vector<8x64xf32>
    %57 = arith.select %54, %55, %56 : vector<8x64xi1>, vector<8x64xf32>
    %58 = arith.addf %51, %57 : vector<8x64xf32>
    %59 = arith.truncf %58 : vector<8x64xf32> to vector<8x64xbf16>
    %c0_17 = arith.constant 0 : index
    %c0_18 = arith.constant 0 : index
    %60 = vector.load %arg3[%c0_17, %c0_18] : memref<64x32xbf16, #tpu.memory_space<vmem>>, vector<64x32xbf16>
    %cst_19 = arith.constant dense<0.000000e+00> : vector<8x32xf32>
    %61 = tpu.matmul %59, %60, %cst_19 {dimension_numbers = #tpu.dot_dimension_numbers<[1], [0], [0], [1], [0, 0, 1, 1], [], []>} : vector<8x64xbf16>, vector<64x32xbf16>, vector<8x32xf32> -> vector<8x32xf32>
    %c0_20 = arith.constant 0 : index
    %c0_21 = arith.constant 0 : index
    %62 = vector.load %arg2[%c0_20, %c0_21] : memref<8x1xf32, #tpu.memory_space<vmem>>, vector<8x1xf32>
    %63 = tpu.reciprocal %62 : vector<8x1xf32> -> vector<8x1xf32>
    %64 = vector.broadcast %63 : vector<8x1xf32> to vector<8x32xf32>
    %65 = arith.mulf %61, %64 : vector<8x32xf32>
    %66 = arith.truncf %65 : vector<8x32xf32> to vector<8x32xbf16>
    %c0_22 = arith.constant 0 : index
    %c0_23 = arith.constant 0 : index
    %67 = vector.load %arg4[%c0_22, %c0_23] : memref<32x128xbf16, #tpu.memory_space<vmem>>, vector<32x128xbf16>
    %cst_24 = arith.constant dense<0.000000e+00> : vector<8x128xf32>
    %68 = tpu.matmul %66, %67, %cst_24 {dimension_numbers = #tpu.dot_dimension_numbers<[1], [0], [0], [1], [0, 0, 1, 1], [], []>} : vector<8x32xbf16>, vector<32x128xbf16>, vector<8x128xf32> -> vector<8x128xf32>
    %c0_25 = arith.constant 0 : index
    %c0_26 = arith.constant 0 : index
    %69 = vector.load %arg5[%c0_25, %c0_26] : memref<1x128xf32, #tpu.memory_space<vmem>>, vector<1x128xf32>
    %70 = vector.broadcast %69 : vector<1x128xf32> to vector<8x128xf32>
    %71 = arith.addf %68, %70 : vector<8x128xf32>
    %c0_27 = arith.constant 0 : index
    %c0_28 = arith.constant 0 : index
    %72 = vector.load %arg6[%c0_27, %c0_28] : memref<8x128xf32, #tpu.memory_space<vmem>>, vector<8x128xf32>
    tpu.vector_store %arg6[%c0_27, %c0_28], %71 {strides = array<i32>} : memref<8x128xf32, #tpu.memory_space<vmem>>, vector<8x128xf32>,
    return
  }
  func.func @transform_0(%arg0: i32) -> (i32, i32) {
    %c0_i32 = arith.constant 0 : i32
    %c0_i32_0 = arith.constant 0 : i32
    return %arg0, %c0_i32 : i32, i32
  }
  func.func @transform_1(%arg0: i32) -> (i32, i32) {
    %c0_i32 = arith.constant 0 : i32
    %c0_i32_0 = arith.constant 0 : i32
    return %arg0, %c0_i32 : i32, i32
  }
  func.func @transform_2(%arg0: i32) -> (i32, i32) {
    %c0_i32 = arith.constant 0 : i32
    %c0_i32_0 = arith.constant 0 : i32
    %c0_i32_1 = arith.constant 0 : i32
    return %c0_i32, %c0_i32_0 : i32, i32
  }
  func.func @transform_3(%arg0: i32) -> (i32, i32) {
    %c0_i32 = arith.constant 0 : i32
    %c0_i32_0 = arith.constant 0 : i32
    %c0_i32_1 = arith.constant 0 : i32
    return %c0_i32, %c0_i32_0 : i32, i32
  }
  func.func @transform_4(%arg0: i32) -> (i32, i32) {
    %c0_i32 = arith.constant 0 : i32
    %c0_i32_0 = arith.constant 0 : i32
    %c0_i32_1 = arith.constant 0 : i32
    return %c0_i32, %c0_i32_0 : i32, i32
  }
  func.func @transform_5(%arg0: i32) -> (i32, i32) {
    %c0_i32 = arith.constant 0 : i32
    %c0_i32_0 = arith.constant 0 : i32
    return %arg0, %c0_i32 : i32, i32
  }
}

</mosaic_0001>

<llo_original>
// kernel: tpu_custom_call.1
$region0: #{tpu_custom_call.1}
  #allocation0 [shape = 'u32[]', space=smem, size = 0x4, offset = 0x4, fixed_abs, tag = 'smem constant byte address 0x4 - core index']
  #allocation1 [shape = 'u32[72,128]{1,0:T(1,128)}', space=vmem, size = 0x9000, scoped, tag = 'internal scratch']
  %s0 = inlined_call_operand.vmem [shape: s32[8,8], index: 0, kind: input, shape index: {}]
  %s1 = inlined_call_operand.vmem [shape: f32[8,1], index: 1, kind: input, shape index: {}]
  %s2 = inlined_call_operand.vmem [shape: bf16[64,32], index: 2, kind: input, shape index: {}]
  %s3 = inlined_call_operand.vmem [shape: bf16[32,128], index: 3, kind: input, shape index: {}]
  %s4 = inlined_call_operand.vmem [shape: f32[1,128], index: 4, kind: input, shape index: {}]
  %s5 = inlined_call_operand.hbm [shape: f32[8,128], index: 5, kind: output, shape index: {}]
  %s6 = sld [smem:[#allocation0]]
  $region30: #{tpu_custom_call.1} parent=0
    _
  %s8 = ssub.s32 1, %s6
  %s9 = scalar_select 0, %s8, %s6
  $region1: #{tpu_custom_call.1} parent=0
    #allocation2 [shape = 'u8[4096]{0}', space=vmem, size = 0x1000, scoped, tag = 'output window, operand 0, single buffered']
    #allocation3 [shape = 's32[1]{0}', space=sflag, size = 0x4, scoped, tag = 'scoped memory for tpu_custom_call.1']
    %10 = vsyncpa [#allocation3], 0
    // Predicated region
    $region2: #{tpu_custom_call.1} parent=1 // pred_check
      _
    $region3: #{tpu_custom_call.1} parent=1 // pred_check_branch
      %12 = sbr.rel (0) target = $region5
    $region4: #{tpu_custom_call.1} parent=1 // pred_region
      _
    $region5: #{tpu_custom_call.1} parent=1 // pred_fallthru
      _
    // Predicated region
    $region6: #{tpu_custom_call.1} parent=1 // pred_check
      _
    $region7: #{tpu_custom_call.1} parent=1 // pred_check_branch
      %14 = sbr.rel (0) target = $region9
    $region8: #{tpu_custom_call.1} parent=1 // pred_region
      _
    $region9: #{tpu_custom_call.1} parent=1 // pred_fallthru
      _
    // Predicated region
    $region10: #{tpu_custom_call.1} parent=1 // pred_check
      _
    $region11: #{tpu_custom_call.1} parent=1 // pred_check_branch
      %16 = sbr.rel (0) target = $region13
    $region12: #{tpu_custom_call.1} parent=1 // pred_region
      _
    $region13: #{tpu_custom_call.1} parent=1 // pred_fallthru
      _
    // Predicated region
    $region14: #{tpu_custom_call.1} parent=1 // pred_check
      _
    $region15: #{tpu_custom_call.1} parent=1 // pred_check_branch
      %18 = sbr.rel (0) target = $region17
    $region16: #{tpu_custom_call.1} parent=1 // pred_region
      _
    $region17: #{tpu_custom_call.1} parent=1 // pred_fallthru
      _
    // Predicated region
    $region18: #{tpu_custom_call.1} parent=1 // pred_check
      _
    $region19: #{tpu_custom_call.1} parent=1 // pred_check_branch
      %20 = sbr.rel (0) target = $region21
    $region20: #{tpu_custom_call.1} parent=1 // pred_region
      _
    $region21: #{tpu_custom_call.1} parent=1 // pred_fallthru
      _
    %v22 = vld [vmem:[%s0] sm:$0xff]
    %v23 = vlaneseq
    %v24 = vand.u32 %v23, 127
    %25 = vset.pattern.permute.xlu0 0
    %26 = vperm.xlu0 %25, %v22
    %v27 = vpop.permute.xlu0 %26
    %vm28 = vcmp.eq.s32.totalorder %v27, %v24
    %v29 = vsel %vm28, 1.0, 0.0
    %v30 = vadd.f32 %v29, 0.0
    %31 = vset.pattern.permute.xlu0 1
    %32 = vperm.xlu0 %31, %v22
    %v33 = vpop.permute.xlu0 %32
    %vm34 = vcmp.eq.s32.totalorder %v33, %v24
    %v35 = vsel %vm34, 1.0, 0.0
    %v36 = vadd.f32 %v30, %v35
    %37 = vset.pattern.permute.xlu0 2
    %38 = vperm.xlu0 %37, %v22
    %v39 = vpop.permute.xlu0 %38
    %vm40 = vcmp.eq.s32.totalorder %v39, %v24
    %v41 = vsel %vm40, 1.0, 0.0
    %v42 = vadd.f32 %v36, %v41
    %43 = vset.pattern.permute.xlu0 3
    %44 = vperm.xlu0 %43, %v22
    %v45 = vpop.permute.xlu0 %44
    %vm46 = vcmp.eq.s32.totalorder %v45, %v24
    %v47 = vsel %vm46, 1.0, 0.0
    %v48 = vadd.f32 %v42, %v47
    %49 = vset.pattern.permute.xlu0 4
    %50 = vperm.xlu0 %49, %v22
    %v51 = vpop.permute.xlu0 %50
    %vm52 = vcmp.eq.s32.totalorder %v51, %v24
    %v53 = vsel %vm52, 1.0, 0.0
    %v54 = vadd.f32 %v48, %v53
    %55 = vset.pattern.permute.xlu0 5
    %56 = vperm.xlu0 %55, %v22
    %v57 = vpop.permute.xlu0 %56
    %vm58 = vcmp.eq.s32.totalorder %v57, %v24
    %v59 = vsel %vm58, 1.0, 0.0
    %v60 = vadd.f32 %v54, %v59
    %61 = vset.pattern.permute.xlu0 6
    %62 = vperm.xlu0 %61, %v22
    %v63 = vpop.permute.xlu0 %62
    %vm64 = vcmp.eq.s32.totalorder %v63, %v24
    %v65 = vsel %vm64, 1.0, 0.0
    %v66 = vadd.f32 %v60, %v65
    %67 = vset.pattern.permute.xlu0 7
    %68 = vperm.xlu0 %67, %v22
    %v69 = vpop.permute.xlu0 %68
    %vm70 = vcmp.eq.s32.totalorder %v69, %v24
    %v71 = vsel %vm70, 1.0, 0.0
    %v72 = vadd.f32 %v66, %v71
    %v73 = vpack.c.bf16 %v72, %v72
    %v74 = vld [vmem:[%s2] sm:$0xf]
    %v75 = vld [vmem:[%s2 + $0x4] sm:$0xf]
    %v76 = vld [vmem:[%s2 + $0x8] sm:$0xf]
    %v77 = vld [vmem:[%s2 + $0xc] sm:$0xf]
    %v78 = vld [vmem:[%s2 + $0x10] sm:$0xf]
    %v79 = vld [vmem:[%s2 + $0x14] sm:$0xf]
    %v80 = vld [vmem:[%s2 + $0x18] sm:$0xf]
    %v81 = vld [vmem:[%s2 + $0x1c] sm:$0xf]
    %v90 = vunpack.c.l.b16 %v74
    %v91 = vunpack.c.l.b16 %v75
    %v92 = vunpack.c.l.b16 %v76
    %v93 = vunpack.c.l.b16 %v77
    %v94 = vunpack.c.l.b16 %v78
    %v95 = vunpack.c.l.b16 %v79
    %v96 = vunpack.c.l.b16 %v80
    %v97 = vunpack.c.l.b16 %v81
    %v98 = vpack.c.b16 %v91, %v90
    %v99 = vpack.c.b16 %v93, %v92
    %v100 = vpack.c.b16 %v95, %v94
    %v101 = vpack.c.b16 %v97, %v96
    %vm106 = vcmask 523264
    %v108 = vsel %vm106, %v73, 0
    %110 = vmatpush.bf16.msra.mxu0 0
    %111 = vmatpush.bf16.msra.mxu0 0
    %112 = vmatpush.bf16.msra.mxu0 0
    %113 = vmatpush.bf16.msra.mxu0 0
    %114 = vmatpush.bf16.msra.mxu0 %v101
    %115 = vmatpush.bf16.msra.mxu0 %v100
    %116 = vmatpush.bf16.msra.mxu0 %v99
    %117 = vmatpush.bf16.msra.mxu0 %v98
    %118 = vmatmul.bf16.gmra.mxu0 %v108
    %v119 = vpop.f32.mrf.mxu0
    %v120 = vadd.f32 0.0, %v119
    %v121 = vpop.f32.mrf.mxu0
    %122 = vdwg.mxu0
    %v123 = vld [vmem:[%s1] sm:$0xff]
    %v124 = vrcp.pop %v123
    %v125 = vmul.f32 %v123, %v124
    %v126 = vsub.f32 1.0, %v125
    %v127 = vmul.f32 %v124, %v126
    %v128 = vadd.f32 %v124, %v127
    %vm129 = vweird.f32 %v123
    %vm130 = vweird.f32 %v124
    %vm131 = vmor %vm129, %vm130
    %v132 = vsel %vm131, %v124, %v128
    %v133 = vand.u32 2147483647, %v123
    %vm134 = vcmp.eq.f32.partialorder %v133, 8.507059e+37
    %v135 = vand.u32 %v123, 2147483648
    %v136 = vor.u32 1.1754944e-38, %v135
    %v137 = vsel %vm134, %v136, %v132
    %139 = vset.pattern.permute.xlu0 0
    %140 = vperm.xlu0 %139, %v137
    %v141 = vpop.permute.xlu0 %140
    %v143 = vmul.f32 %v120, %v141
    %v144 = vpack.c.bf16 %v143, %v143
    %v145 = vld [vmem:[%s3] sm:$0xf]
    %v146 = vld [vmem:[%s3 + $0x4] sm:$0xf]
    %v147 = vld [vmem:[%s3 + $0x8] sm:$0xf]
    %v148 = vld [vmem:[%s3 + $0xc] sm:$0xf]
    %v149 = vld [vmem:[%s4] sm:$0x1]
    %v151 = vperm.slane %v149, 0
    %v157 = vunpack.c.l.b16 %v145
    %v158 = vunpack.c.l.b16 %v146
    %v159 = vunpack.c.l.b16 %v147
    %v160 = vunpack.c.l.b16 %v148
    %v161 = vpack.c.b16 %v158, %v157
    %v162 = vpack.c.b16 %v160, %v159
    %vm165 = vcmask 261120
    %v167 = vsel %vm165, %v144, 0
    %169 = vmatpush.bf16.msra.mxu0 0
    %170 = vmatpush.bf16.msra.mxu0 0
    %171 = vmatpush.bf16.msra.mxu0 0
    %172 = vmatpush.bf16.msra.mxu0 0
    %173 = vmatpush.bf16.msra.mxu0 0
    %174 = vmatpush.bf16.msra.mxu0 0
    %175 = vmatpush.bf16.msra.mxu0 %v162
    %176 = vmatpush.bf16.msra.mxu0 %v161
    %177 = vmatmul.bf16.gmra.mxu0 %v167
    %v178 = vpop.f32.mrf.mxu0
    %v179 = vadd.f32 %v151, %v178
    %v180 = vpop.f32.mrf.mxu0
    %181 = vdwg.mxu0
    %182 = vst [vmem:[#allocation2] sm:$0xff] %v179
    // Predicated region
    $region22: #{tpu_custom_call.1} parent=1 // pred_check
      _
    $region23: #{tpu_custom_call.1} parent=1 // pred_check_branch
      %184 = sbr.rel (0) target = $region25
    $region24: #{tpu_custom_call.1} parent=1 // pred_region
      %186 = vsyncadd [#allocation3], 0
      %s188 = sshll.u32 [#allocation2], 4
      %s189 = int_to_ptr.vmem [resolvable:$true] %s188
      %s190 = sshll.u32 %s5, 4
      %s191 = int_to_ptr.hbm [resolvable:$true] %s190
      %193 = dma.vmem_to_hbm [thread:$0]  %s189, 128, %s191, [#allocation3]
    $region25: #{tpu_custom_call.1} parent=1 // pred_fallthru
      _
    // Predicated region
    $region26: #{tpu_custom_call.1} parent=1 // pred_check
      _
    $region27: #{tpu_custom_call.1} parent=1 // pred_check_branch
      %195 = sbr.rel (0) target = $region29
    $region28: #{tpu_custom_call.1} parent=1 // pred_region
      %197 = dma.done [#allocation3], 128
    $region29: #{tpu_custom_call.1} parent=1 // pred_fallthru
      _
    %198 = vsyncpa [#allocation3], 1

</llo_original>
